<compile_context>
chip_gen: v7x
topology: tpu7x:2x2x1
jax: 0.10.0
libtpu: 0.0.40
codegen_flags: <defaults>
</compile_context>

<pallas_src>
import functools

import jax
import jax.numpy as jnp
import numpy as np
from jax.experimental import pallas as pl
from jax.experimental.pallas import tpu as pltpu

REG_MAX = 16
NUM_CLASSES = 80
NO = NUM_CLASSES + 4 * REG_MAX      # 144 channels per feature map
OUT_C = 4 + NUM_CLASSES             # 84 output channels


def _round_up(x, m):
    return (x + m - 1) // m * m


# ----------------------------------------------------------------------------- kernel
def _decode_level_kernel(x_ref, out_ref, *, width, stride, a_tile):
    # x_ref:   (1, 144, T)  raw head tile for ONE pyramid level
    #                       rows 0..63: DFL box logits (4 sides x 16 bins), 64..143: class logits
    # out_ref: (1,  84, T)  [cx, cy, w, h, sigmoid(cls) x 80]
    # width / stride / a_tile are static per-level Python values baked at trace time.

    # ----- anchors, generated in-kernel (exact; no meta table / extra HBM traffic) -----
    t = pl.program_id(1)
    base = (t * a_tile).astype(jnp.float32)
    j = jax.lax.broadcasted_iota(jnp.int32, (1, a_tile), 1).astype(jnp.float32) + base  # (1, T)
    inv_w = float(1.0 / width)
    row = jnp.floor((j + 0.5) * inv_w)          # j // W  (exact: 0.5/W margin >> rounding error)
    col = j - row * float(width)                # j %  W
    ax = col + 0.5
    ay = row + 0.5

    # ----- DFL: softmax over 16 bins, expected value with weights 0..15, per side -----
    dfl_w = jax.lax.broadcasted_iota(jnp.int32, (REG_MAX, 1), 0).astype(jnp.float32)
    dists = []
    for side in range(4):                                              # l, t, r, b
        chunk = x_ref[0, side * REG_MAX:(side + 1) * REG_MAX, :].astype(jnp.float32)  # (16, T)
        m = jnp.max(chunk, axis=0, keepdims=True)
        e = jnp.exp(chunk - m)
        num = jnp.sum(e * dfl_w, axis=0, keepdims=True)                # (1, T)
        den = jnp.sum(e, axis=0, keepdims=True)                        # (1, T)
        dists.append(num * pl.reciprocal(den, approx=False))           # EUP reciprocal
    lt_x, lt_y, rb_x, rb_y = dists

    # ----- dist2bbox (xywh) * stride -----
    x1 = ax - lt_x
    y1 = ay - lt_y
    x2 = ax + rb_x
    y2 = ay + rb_y
    cx = (x1 + x2) * 0.5
    cy = (y1 + y2) * 0.5
    bw = x2 - x1
    bh = y2 - y1
    box = jnp.concatenate([cx, cy, bw, bh], axis=0) * float(stride)    # (4, T)
    out_ref[0, 0:4, :] = box.astype(out_ref.dtype)

    # ----- class scores: numerically stable sigmoid (no inf intermediates) -----
    cls = x_ref[0, 4 * REG_MAX:4 * REG_MAX + NUM_CLASSES, :].astype(jnp.float32)      # (80, T)
    e = jnp.exp(-jnp.abs(cls))
    r = pl.reciprocal(1.0 + e, approx=False)
    sig = jnp.where(cls >= 0.0, r, e * r)
    # TODO(synk): store starts at sublane offset 4 (masked stores for 80 rows); left as-is per
    # review ("verify with a bundle dump first"), it is hidden under DMA on v5e/v6e.
    out_ref[0, 4:4 + NUM_CLASSES, :] = sig.astype(out_ref.dtype)


# ----------------------------------------------------------------------------- wrappers
def _pick_tile(a_len, max_tile):
    """Lane-tile for one level: whole level if small, else a 128-aligned tile (>=2 blocks)."""
    assert max_tile % 128 == 0
    if a_len <= max_tile:
        half = _round_up((a_len + 1) // 2, 128)
        return half if half < a_len else a_len   # ragged last block handled by Pallas
    return max_tile


def _decode_level(x_flat, *, width, stride, max_tile=2048,
                  vmem_limit_bytes=32 * 1024 * 1024):
    """Decode one pyramid level: (B, 144, A_l) -> (B, 84, A_l)."""
    B, C, A = x_flat.shape
    assert C == NO
    tile = _pick_tile(A, max_tile)
    n_a = pl.cdiv(A, tile)
    kernel = functools.partial(_decode_level_kernel, width=width, stride=stride, a_tile=tile)
    return pl.pallas_call(
        kernel,
        out_shape=jax.ShapeDtypeStruct((B, OUT_C, A), x_flat.dtype),
        grid=(B, n_a),
        in_specs=[pl.BlockSpec((1, NO, tile), lambda b, a: (b, 0, a))],
        out_specs=pl.BlockSpec((1, OUT_C, tile), lambda b, a: (b, 0, a)),
        compiler_params=pltpu.CompilerParams(
            dimension_semantics=("parallel", "parallel"),
            vmem_limit_bytes=vmem_limit_bytes),
    )(x_flat)


def util_decode_bboxes(outputs, stride_list, *, max_tile=2048):
    bsz = outputs[0].shape[0]
    per_level = []
    for feat, st in zip(outputs, stride_list):
        _, _, h, w = feat.shape
        x_flat = feat.reshape(bsz, NO, h * w)        # NCHW -> (B,144,H*W): free layout bitcast
        per_level.append(_decode_level(x_flat, width=w, stride=float(st), max_tile=max_tile))
    # TODO(synk): remaining XLA-side pass; level offsets are not 128-lane aligned in general, so
    # writing directly into a shared (B,84,A) buffer needs manual element-offset DMA (pl.ANY).
    return jnp.concatenate(per_level, axis=2)


class PostProcessing:
    """JAX/Pallas mirror of the PyTorch PostProcessing module."""

    def __init__(self, stride=None, is_detection=True, is_export_mode=True):
        if stride is None:
            stride = [8.0, 16.0, 32.0]
        self.stride = jnp.asarray(stride, dtype=jnp.float32)   # parity with the torch buffer
        self.stride_list = [float(s) for s in stride]          # static per-level constants
        self.is_detection = is_detection
        self.is_export_mode = is_export_mode

    def __call__(self, outputs):
        x = outputs[:3]
        bboxes = util_decode_bboxes(x, self.stride_list)
        if self.is_detection:
            final = [bboxes]
            if not self.is_export_mode:
                final.append(outputs)
            return tuple(final)
        else:
            mc, p = outputs[3:]
            final = [bboxes]
            if self.is_export_mode:
                final.append(p)
            else:
                final.extend([*x, mc, p])
            return tuple(final)


# ---------------------------------------------------------------------------- reference
def ref_decode(outputs, stride):
    anchor_points, stride_tensor = [], []
    for feat, st in zip(outputs, stride):
        _, _, h, w = feat.shape
        sx = jnp.arange(w, dtype=jnp.float32) + 0.5
        sy = jnp.arange(h, dtype=jnp.float32) + 0.5
        sy_g, sx_g = jnp.meshgrid(sy, sx, indexing="ij")
        anchor_points.append(jnp.stack((sx_g, sy_g), -1).reshape(-1, 2))
        stride_tensor.append(jnp.full((h * w, 1), st, dtype=jnp.float32))
    anchors = jnp.concatenate(anchor_points, 0).T           # (2, A)
    strides_t = jnp.concatenate(stride_tensor, 0).T         # (1, A)
    bsz = outputs[0].shape[0]
    x_cat = jnp.concatenate([x.reshape(bsz, NO, -1) for x in outputs], axis=2)
    box, cls = x_cat[:, :4 * REG_MAX], x_cat[:, 4 * REG_MAX:]
    A = box.shape[-1]
    b = box.reshape(bsz, 4, REG_MAX, A).transpose(0, 2, 1, 3)     # (B, 16, 4, A)
    b = jax.nn.softmax(b, axis=1)
    w = jnp.arange(REG_MAX, dtype=jnp.float32).reshape(1, REG_MAX, 1, 1)
    dist = jnp.sum(b * w, axis=1)                                 # (B, 4, A)
    lt, rb = dist[:, :2], dist[:, 2:]
    x1y1 = anchors[None] - lt
    x2y2 = anchors[None] + rb
    c_xy = (x1y1 + x2y2) / 2
    wh = x2y2 - x1y1
    dbox = jnp.concatenate([c_xy, wh], axis=1) * strides_t
    return jnp.concatenate([dbox, jax.nn.sigmoid(cls)], axis=1)


if __name__ == "__main__":
    key = jax.random.PRNGKey(0)
    B = 2
    spatial = [(8, 8), (4, 4), (2, 2)]        # strides 8, 16, 32 -> A = 64 + 16 + 4 = 84
    keys = jax.random.split(key, 3)
    outputs = [
        jax.random.normal(k, (B, NO, h, w), dtype=jnp.float32)
        for k, (h, w) in zip(keys, spatial)
    ]

    pp = PostProcessing(stride=[8.0, 16.0, 32.0], is_detection=True, is_export_mode=True)
    (bboxes,) = pp(outputs)
    bboxes = jax.block_until_ready(bboxes)

    ref = ref_decode(outputs, pp.stride)
    np.testing.assert_allclose(np.asarray(bboxes), np.asarray(ref), rtol=1e-4, atol=1e-4)
    print("KERNEL_OK")
</pallas_src>

<mosaic_0001>
module attributes {stable_mosaic.version = 11 : i64} {
  func.func @_decode_level_kernel(%arg0: i32, %arg1: i32, %arg2: memref<1x144x64xf32, #tpu.memory_space<vmem>>, %arg3: memref<1x84x64xf32, #tpu.memory_space<vmem>>) attributes {dimension_semantics = [#tpu.dimension_semantics<parallel>, #tpu.dimension_semantics<parallel>], iteration_bounds = array<i64: 2, 1>, scalar_prefetch = 0 : i64, scratch_operands = 0 : i64, tpu.core_type = #tpu.core_type<tc>, window_params = [{transform_indices = @transform_0, window_bounds = array<i64: 1, 144, 64>}, {transform_indices = @transform_1, window_bounds = array<i64: 1, 84, 64>}]} {
    %c64_i32 = arith.constant 64 : i32
    %0 = arith.muli %arg1, %c64_i32 : i32
    %1 = arith.sitofp %0 : i32 to f32
    %2 = tpu.iota {dimensions = array<i32: 1>} : vector<1x64xi32>
    %3 = arith.sitofp %2 : vector<1x64xi32> to vector<1x64xf32>
    %4 = vector.broadcast %1 : f32 to vector<1x64xf32>
    %5 = arith.addf %3, %4 : vector<1x64xf32>
    %cst = arith.constant 5.000000e-01 : f32
    %6 = vector.broadcast %cst : f32 to vector<1x64xf32>
    %7 = arith.addf %5, %6 : vector<1x64xf32>
    %cst_0 = arith.constant 1.250000e-01 : f32
    %8 = vector.broadcast %cst_0 : f32 to vector<1x64xf32>
    %9 = arith.mulf %7, %8 : vector<1x64xf32>
    %10 = math.floor %9 : vector<1x64xf32>
    %cst_1 = arith.constant 8.000000e+00 : f32
    %11 = vector.broadcast %cst_1 : f32 to vector<1x64xf32>
    %12 = arith.mulf %10, %11 : vector<1x64xf32>
    %13 = arith.subf %5, %12 : vector<1x64xf32>
    %cst_2 = arith.constant 5.000000e-01 : f32
    %14 = vector.broadcast %cst_2 : f32 to vector<1x64xf32>
    %15 = arith.addf %13, %14 : vector<1x64xf32>
    %cst_3 = arith.constant 5.000000e-01 : f32
    %16 = vector.broadcast %cst_3 : f32 to vector<1x64xf32>
    %17 = arith.addf %10, %16 : vector<1x64xf32>
    %18 = tpu.iota {dimensions = array<i32: 0>} : vector<16x1xi32>
    %19 = arith.sitofp %18 : vector<16x1xi32> to vector<16x1xf32>
    %c0 = arith.constant 0 : index
    %c0_4 = arith.constant 0 : index
    %c0_5 = arith.constant 0 : index
    %20 = vector.load %arg2[%c0, %c0_4, %c0_5] : memref<1x144x64xf32, #tpu.memory_space<vmem>>, vector<1x16x64xf32>
    %21 = vector.shape_cast %20 : vector<1x16x64xf32> to vector<16x64xf32>
    %cst_6 = arith.constant dense<0xFF800000> : vector<64xf32>
    %22 = vector.multi_reduction <maximumf>, %21, %cst_6 [0] : vector<16x64xf32> to vector<64xf32>
    %23 = vector.shape_cast %22 : vector<64xf32> to vector<1x64xf32>
    %24 = vector.broadcast %23 : vector<1x64xf32> to vector<16x64xf32>
    %25 = arith.subf %21, %24 : vector<16x64xf32>
    %26 = math.exp %25 : vector<16x64xf32>
    %27 = vector.broadcast %19 : vector<16x1xf32> to vector<16x64xf32>
    %28 = arith.mulf %26, %27 : vector<16x64xf32>
    %cst_7 = arith.constant dense<0.000000e+00> : vector<64xf32>
    %29 = vector.multi_reduction <add>, %28, %cst_7 [0] : vector<16x64xf32> to vector<64xf32>
    %30 = vector.shape_cast %29 : vector<64xf32> to vector<1x64xf32>
    %cst_8 = arith.constant dense<0.000000e+00> : vector<64xf32>
    %31 = vector.multi_reduction <add>, %26, %cst_8 [0] : vector<16x64xf32> to vector<64xf32>
    %32 = vector.shape_cast %31 : vector<64xf32> to vector<1x64xf32>
    %33 = tpu.reciprocal %32 : vector<1x64xf32> -> vector<1x64xf32>
    %34 = arith.mulf %30, %33 : vector<1x64xf32>
    %c0_9 = arith.constant 0 : index
    %c16 = arith.constant 16 : index
    %c0_10 = arith.constant 0 : index
    %35 = vector.load %arg2[%c0_9, %c16, %c0_10] : memref<1x144x64xf32, #tpu.memory_space<vmem>>, vector<1x16x64xf32>
    %36 = vector.shape_cast %35 : vector<1x16x64xf32> to vector<16x64xf32>
    %cst_11 = arith.constant dense<0xFF800000> : vector<64xf32>
    %37 = vector.multi_reduction <maximumf>, %36, %cst_11 [0] : vector<16x64xf32> to vector<64xf32>
    %38 = vector.shape_cast %37 : vector<64xf32> to vector<1x64xf32>
    %39 = vector.broadcast %38 : vector<1x64xf32> to vector<16x64xf32>
    %40 = arith.subf %36, %39 : vector<16x64xf32>
    %41 = math.exp %40 : vector<16x64xf32>
    %42 = vector.broadcast %19 : vector<16x1xf32> to vector<16x64xf32>
    %43 = arith.mulf %41, %42 : vector<16x64xf32>
    %cst_12 = arith.constant dense<0.000000e+00> : vector<64xf32>
    %44 = vector.multi_reduction <add>, %43, %cst_12 [0] : vector<16x64xf32> to vector<64xf32>
    %45 = vector.shape_cast %44 : vector<64xf32> to vector<1x64xf32>
    %cst_13 = arith.constant dense<0.000000e+00> : vector<64xf32>
    %46 = vector.multi_reduction <add>, %41, %cst_13 [0] : vector<16x64xf32> to vector<64xf32>
    %47 = vector.shape_cast %46 : vector<64xf32> to vector<1x64xf32>
    %48 = tpu.reciprocal %47 : vector<1x64xf32> -> vector<1x64xf32>
    %49 = arith.mulf %45, %48 : vector<1x64xf32>
    %c0_14 = arith.constant 0 : index
    %c32 = arith.constant 32 : index
    %c0_15 = arith.constant 0 : index
    %50 = vector.load %arg2[%c0_14, %c32, %c0_15] : memref<1x144x64xf32, #tpu.memory_space<vmem>>, vector<1x16x64xf32>
    %51 = vector.shape_cast %50 : vector<1x16x64xf32> to vector<16x64xf32>
    %cst_16 = arith.constant dense<0xFF800000> : vector<64xf32>
    %52 = vector.multi_reduction <maximumf>, %51, %cst_16 [0] : vector<16x64xf32> to vector<64xf32>
    %53 = vector.shape_cast %52 : vector<64xf32> to vector<1x64xf32>
    %54 = vector.broadcast %53 : vector<1x64xf32> to vector<16x64xf32>
    %55 = arith.subf %51, %54 : vector<16x64xf32>
    %56 = math.exp %55 : vector<16x64xf32>
    %57 = vector.broadcast %19 : vector<16x1xf32> to vector<16x64xf32>
    %58 = arith.mulf %56, %57 : vector<16x64xf32>
    %cst_17 = arith.constant dense<0.000000e+00> : vector<64xf32>
    %59 = vector.multi_reduction <add>, %58, %cst_17 [0] : vector<16x64xf32> to vector<64xf32>
    %60 = vector.shape_cast %59 : vector<64xf32> to vector<1x64xf32>
    %cst_18 = arith.constant dense<0.000000e+00> : vector<64xf32>
    %61 = vector.multi_reduction <add>, %56, %cst_18 [0] : vector<16x64xf32> to vector<64xf32>
    %62 = vector.shape_cast %61 : vector<64xf32> to vector<1x64xf32>
    %63 = tpu.reciprocal %62 : vector<1x64xf32> -> vector<1x64xf32>
    %64 = arith.mulf %60, %63 : vector<1x64xf32>
    %c0_19 = arith.constant 0 : index
    %c48 = arith.constant 48 : index
    %c0_20 = arith.constant 0 : index
    %65 = vector.load %arg2[%c0_19, %c48, %c0_20] : memref<1x144x64xf32, #tpu.memory_space<vmem>>, vector<1x16x64xf32>
    %66 = vector.shape_cast %65 : vector<1x16x64xf32> to vector<16x64xf32>
    %cst_21 = arith.constant dense<0xFF800000> : vector<64xf32>
    %67 = vector.multi_reduction <maximumf>, %66, %cst_21 [0] : vector<16x64xf32> to vector<64xf32>
    %68 = vector.shape_cast %67 : vector<64xf32> to vector<1x64xf32>
    %69 = vector.broadcast %68 : vector<1x64xf32> to vector<16x64xf32>
    %70 = arith.subf %66, %69 : vector<16x64xf32>
    %71 = math.exp %70 : vector<16x64xf32>
    %72 = vector.broadcast %19 : vector<16x1xf32> to vector<16x64xf32>
    %73 = arith.mulf %71, %72 : vector<16x64xf32>
    %cst_22 = arith.constant dense<0.000000e+00> : vector<64xf32>
    %74 = vector.multi_reduction <add>, %73, %cst_22 [0] : vector<16x64xf32> to vector<64xf32>
    %75 = vector.shape_cast %74 : vector<64xf32> to vector<1x64xf32>
    %cst_23 = arith.constant dense<0.000000e+00> : vector<64xf32>
    %76 = vector.multi_reduction <add>, %71, %cst_23 [0] : vector<16x64xf32> to vector<64xf32>
    %77 = vector.shape_cast %76 : vector<64xf32> to vector<1x64xf32>
    %78 = tpu.reciprocal %77 : vector<1x64xf32> -> vector<1x64xf32>
    %79 = arith.mulf %75, %78 : vector<1x64xf32>
    %80 = arith.subf %15, %34 : vector<1x64xf32>
    %81 = arith.subf %17, %49 : vector<1x64xf32>
    %82 = arith.addf %15, %64 : vector<1x64xf32>
    %83 = arith.addf %17, %79 : vector<1x64xf32>
    %84 = arith.addf %80, %82 : vector<1x64xf32>
    %cst_24 = arith.constant 5.000000e-01 : f32
    %85 = vector.broadcast %cst_24 : f32 to vector<1x64xf32>
    %86 = arith.mulf %84, %85 : vector<1x64xf32>
    %87 = arith.addf %81, %83 : vector<1x64xf32>
    %cst_25 = arith.constant 5.000000e-01 : f32
    %88 = vector.broadcast %cst_25 : f32 to vector<1x64xf32>
    %89 = arith.mulf %87, %88 : vector<1x64xf32>
    %90 = arith.subf %82, %80 : vector<1x64xf32>
    %91 = arith.subf %83, %81 : vector<1x64xf32>
    %92 = tpu.concatenate %86, %89, %90, %91 in 0 : vector<1x64xf32>, vector<1x64xf32>, vector<1x64xf32>, vector<1x64xf32> -> vector<4x64xf32>
    %cst_26 = arith.constant 8.000000e+00 : f32
    %93 = vector.broadcast %cst_26 : f32 to vector<4x64xf32>
    %94 = arith.mulf %92, %93 : vector<4x64xf32>
    %c0_27 = arith.constant 0 : index
    %c0_28 = arith.constant 0 : index
    %c0_29 = arith.constant 0 : index
    %95 = vector.load %arg3[%c0_27, %c0_28, %c0_29] : memref<1x84x64xf32, #tpu.memory_space<vmem>>, vector<1x4x64xf32>
    %96 = vector.shape_cast %95 : vector<1x4x64xf32> to vector<4x64xf32>
    %97 = vector.shape_cast %94 : vector<4x64xf32> to vector<1x4x64xf32>
    tpu.vector_store %arg3[%c0_27, %c0_28, %c0_29], %97 {strides = array<i32>} : memref<1x84x64xf32, #tpu.memory_space<vmem>>, vector<1x4x64xf32>,
    %c0_30 = arith.constant 0 : index
    %c64 = arith.constant 64 : index
    %c0_31 = arith.constant 0 : index
    %98 = vector.load %arg2[%c0_30, %c64, %c0_31] : memref<1x144x64xf32, #tpu.memory_space<vmem>>, vector<1x80x64xf32>
    %99 = vector.shape_cast %98 : vector<1x80x64xf32> to vector<80x64xf32>
    %100 = math.absf %99 : vector<80x64xf32>
    %cst_32 = arith.constant 0.000000e+00 : f32
    %101 = vector.broadcast %cst_32 : f32 to vector<80x64xf32>
    %102 = arith.subf %101, %100 : vector<80x64xf32>
    %103 = math.exp %102 : vector<80x64xf32>
    %cst_33 = arith.constant 1.000000e+00 : f32
    %104 = vector.broadcast %cst_33 : f32 to vector<80x64xf32>
    %105 = arith.addf %104, %103 : vector<80x64xf32>
    %106 = tpu.reciprocal %105 : vector<80x64xf32> -> vector<80x64xf32>
    %cst_34 = arith.constant 0.000000e+00 : f32
    %107 = vector.broadcast %cst_34 : f32 to vector<80x64xf32>
    %108 = arith.cmpf oge, %99, %107 : vector<80x64xf32>
    %109 = arith.mulf %103, %106 : vector<80x64xf32>
    %110 = arith.select %108, %106, %109 : vector<80x64xi1>, vector<80x64xf32>
    %c0_35 = arith.constant 0 : index
    %c4 = arith.constant 4 : index
    %c0_36 = arith.constant 0 : index
    %111 = vector.load %arg3[%c0_35, %c4, %c0_36] : memref<1x84x64xf32, #tpu.memory_space<vmem>>, vector<1x80x64xf32>
    %112 = vector.shape_cast %111 : vector<1x80x64xf32> to vector<80x64xf32>
    %113 = vector.shape_cast %110 : vector<80x64xf32> to vector<1x80x64xf32>
    tpu.vector_store %arg3[%c0_35, %c4, %c0_36], %113 {strides = array<i32>} : memref<1x84x64xf32, #tpu.memory_space<vmem>>, vector<1x80x64xf32>,
    return
  }
  func.func @transform_0(%arg0: i32, %arg1: i32) -> (i32, i32, i32) {
    %c0_i32 = arith.constant 0 : i32
    %c0_i32_0 = arith.constant 0 : i32
    return %arg0, %c0_i32, %arg1 : i32, i32, i32
  }
  func.func @transform_1(%arg0: i32, %arg1: i32) -> (i32, i32, i32) {
    %c0_i32 = arith.constant 0 : i32
    %c0_i32_0 = arith.constant 0 : i32
    return %arg0, %c0_i32, %arg1 : i32, i32, i32
  }
}

</mosaic_0001>

<llo_original>
// kernel: tpu_custom_call.1
$region0: #{tpu_custom_call.1}
  #allocation0 [shape = 'u32[]', space=smem, size = 0x4, offset = 0x4, fixed_abs, tag = 'smem constant byte address 0x4 - core index']
  #allocation1 [shape = 'u32[144,128]{1,0:T(1,128)}', space=vmem, size = 0x12000, scoped, tag = 'internal scratch']
  %s0 = inlined_call_operand.vmem [shape: f32[2,144,64], index: 0, kind: input, shape index: {}]
  %s1 = inlined_call_operand.vmem [shape: f32[2,84,64], index: 1, kind: output, shape index: {}]
  %s2 = sld [smem:[#allocation0]]
  $region37: #{tpu_custom_call.1} parent=0
    _
  %s4 = ssub.s32 1, %s2
  %s5 = scalar_select 0, %s4, %s2
  loop: start=0, step=1, limit=4
  $region2: #{tpu_custom_call.1} parent=0 // loop_pre_header
    _
  $region3: #{tpu_custom_call.1} parent=0 // loop_header
    %s7 = sphi 0, %s11
    %p8 = scmp.ge.s32.totalorder %s7, 4
    %s14 = sphi 0, %s26
    %s15 = sphi 0, %s22
    %s16 = sphi 0, %s14
    %s17 = sphi 0, %s15
    %s18 = sphi 0, %s16
    %s19 = sphi 0, %s17
    %s31 = sphi 0, %s33
    %s34 = sphi 0, %s31
    %s35 = sphi 0, %s34
    %s51 = sphi 0, %s35
    %s59 = sphi 0, %s61
    %s62 = sphi 0, %s59
    %s63 = sphi 0, %s62
    %s79 = sphi 0, %s63
  $region4: #{tpu_custom_call.1} parent=0 // loop_header_branch
    %10 = sbr.rel (%p8) target = $region8
  $region5: #{tpu_custom_call.1} parent=0 // loop_body
    %s12 = ssub.s32 %s7, 1
    %s13 = ssub.s32 %s7, 2
    %s20 = sadd.s32 1, %s15
    %p21 = scmp.ge.s32.totalorder %s20, 1
    %s22 = scalar_select %p21, 0, %s20
    %s23 = sadd.s32 1, %s14
    %s24 = scalar_select %p21, %s23, %s14
    %p25 = scmp.ge.s32.totalorder %s24, 2
    %s26 = scalar_select %p25, 0, %s24
    %s27 = ssub.s32 %s14, %s26
    %s28 = ssub.s32 %s15, %s22
    %s29 = sor.u32 %s27, %s28
    %p30 = scmp.eq.s32.totalorder %s29, 0
    %s32 = sadd.s32 %s31, 1
    %s33 = scalar_select %p30, %s31, %s32
    %p36 = pneg %p30
    %p37 = scmp.eq.s32.totalorder %s7, 1
    %p38 = por %p36, %p37
    %p39 = scmp.ne.s32.totalorder %s31, %s34
    %p40 = scmp.eq.s32.totalorder %s7, 0
    %p41 = por %p39, %p40
    %p42 = scmp.ne.s32.totalorder %s31, %s34
    %p43 = scmp.eq.s32.totalorder %s12, 1
    %p44 = por %p42, %p43
    %p45 = scmp.ne.s32.totalorder %s34, %s35
    %p46 = scmp.eq.s32.totalorder %s12, 0
    %p47 = por %p45, %p46
    %p48 = scmp.ne.s32.totalorder %s34, %s35
    %p49 = scmp.eq.s32.totalorder %s13, 1
    %p50 = por %p48, %p49
    %p52 = scmp.ne.s32.totalorder %s35, %s51
    %p53 = scmp.eq.s32.totalorder %s13, 0
    %p54 = por %p52, %p53
    %s55 = ssub.s32 %s14, %s26
    %s56 = ssub.s32 %s15, %s22
    %s57 = sor.u32 %s55, %s56
    %p58 = scmp.eq.s32.totalorder %s57, 0
    %s60 = sadd.s32 %s59, 1
    %s61 = scalar_select %p58, %s59, %s60
    %p64 = pneg %p58
    %p65 = scmp.eq.s32.totalorder %s7, 1
    %p66 = por %p64, %p65
    %p67 = scmp.ne.s32.totalorder %s59, %s62
    %p68 = scmp.eq.s32.totalorder %s7, 0
    %p69 = por %p67, %p68
    %p70 = scmp.ne.s32.totalorder %s59, %s62
    %p71 = scmp.eq.s32.totalorder %s12, 1
    %p72 = por %p70, %p71
    %p73 = scmp.ne.s32.totalorder %s62, %s63
    %p74 = scmp.eq.s32.totalorder %s12, 0
    %p75 = por %p73, %p74
    %p76 = scmp.ne.s32.totalorder %s62, %s63
    %p77 = scmp.eq.s32.totalorder %s13, 1
    %p78 = por %p76, %p77
    %p80 = scmp.ne.s32.totalorder %s63, %s79
    %p81 = scmp.eq.s32.totalorder %s13, 0
    %p82 = por %p80, %p81
    %p83 = scmp.le.s32.totalorder 1, %s7
    %p84 = scmp.lt.s32.totalorder %s7, 3
    %p85 = pnand %p83, %p84
    %p86 = pneg %p85
    // Predicated region
    $region9: #{tpu_custom_call.1} parent=5 // pred_check
      _
    $region10: #{tpu_custom_call.1} parent=5 // pred_check_branch
      %88 = sbr.rel (%p85) target = $region12
    $region11: #{tpu_custom_call.1} parent=5 // pred_region
      %s89 = ssub.s32 %s7, 1
    $region12: #{tpu_custom_call.1} parent=5 // pred_fallthru
      _
    %p90 = scmp.lt.s32.totalorder %s7, 2
    // Predicated region
    $region13: #{tpu_custom_call.1} parent=5 // pred_check
      %p91 = pneg %p90
    $region14: #{tpu_custom_call.1} parent=5 // pred_check_branch
      %93 = sbr.rel (%p91) target = $region16
    $region15: #{tpu_custom_call.1} parent=5 // pred_region
      // Predicated region
      $region17: #{tpu_custom_call.1} parent=15 // pred_check
        %p94 = pneg %p41
      $region18: #{tpu_custom_call.1} parent=15 // pred_check_branch
        %96 = sbr.rel (%p94) target = $region20
      $region19: #{tpu_custom_call.1} parent=15 // pred_region
        %p97 = scmp.lt.s32.totalorder %s14, 1
        %s98 = scalar_select %p97, %s14, 1
        %p99 = scmp.lt.s32.totalorder %s15, 0
        %s100 = scalar_select %p99, %s15, 0
        %s101 = smul.addr %s98, 18
        %s102 = sadd.s32 %s100, %s101
        %s103 = smul.addr %s102, 8
        %s104 = scalar_lea.vmem %s0, %s103
      $region20: #{tpu_custom_call.1} parent=15 // pred_fallthru
        _
    $region16: #{tpu_custom_call.1} parent=5 // pred_fallthru
      _
    %p105 = scmp.le.s32.totalorder 1, %s7
    %p106 = scmp.lt.s32.totalorder %s7, 3
    %p107 = pnand %p105, %p106
    %p108 = pneg %p107
    // Predicated region
    $region21: #{tpu_custom_call.1} parent=5 // pred_check
      _
    $region22: #{tpu_custom_call.1} parent=5 // pred_check_branch
      %110 = sbr.rel (%p107) target = $region24
    $region23: #{tpu_custom_call.1} parent=5 // pred_region
      %s111 = ssub.s32 %s7, 1
      %p112 = scmp.lt.s32.totalorder %s16, 1
      %s113 = scalar_select %p112, %s16, 1
      %p114 = scmp.lt.s32.totalorder %s17, 0
      %s115 = scalar_select %p114, %s17, 0
      %s116 = smul.addr %s113, 18
      %s117 = sadd.s32 %s115, %s116
      %s118 = smul.addr %s117, 8
      %s119 = scalar_lea.vmem %s0, %s118
      %p120 = pneg %p47
      %p121 = pneg %p44
      %p122 = pneg %p75
      %p123 = pneg %p72
      %p124 = scmp.lt.s32.totalorder %s16, 1
      %s125 = scalar_select %p124, %s16, 1
      %p126 = scmp.lt.s32.totalorder %s17, 0
      %s127 = scalar_select %p126, %s17, 0
      %s128 = smul.addr %s125, 11
      %s129 = sadd.s32 %s127, %s128
      %s130 = smul.addr %s129, 8
      %s131 = scalar_lea.vmem %s1, %s130
      %p132 = scmp.lt.s32.totalorder %s16, 1
      %s133 = scalar_select %p132, %s16, 1
      %p134 = scmp.lt.s32.totalorder %s17, 0
      %s135 = scalar_select %p134, %s17, 0
      %s136 = smul.addr %s133, 18
      %s137 = sadd.s32 %s135, %s136
      %s138 = smul.addr %s137, 8
      %s139 = scalar_lea.vmem %s0, %s138
      %p140 = scmp.lt.s32.totalorder %s16, 1
      %s141 = scalar_select %p140, %s16, 1
      %p142 = scmp.lt.s32.totalorder %s17, 0
      %s143 = scalar_select %p142, %s17, 0
      %s144 = smul.addr %s141, 11
      %s145 = sadd.s32 %s143, %s144
      %s146 = smul.addr %s145, 8
      %s147 = scalar_lea.vmem %s1, %s146
      %s148 = smul.u32 %s17, 64
      %s149 = scvt.s32.f32 %s148
      %v150 = vlaneseq
      %v151 = vand.u32 %v150, 127
      %v152 = vcvt.s32.f32 %v151
      %v153 = vstv %s149
      %v154 = vadd.f32 %v152, %v153
      %v155 = vadd.f32 %v154, 0.5
      %v156 = vmul.f32 %v155, 0.125
      %v157 = vfloor.f32 %v156
      %v158 = vmul.f32 %v157, 8.0
      %v159 = vsub.f32 %v154, %v158
      %v160 = vadd.f32 %v159, 0.5
      %v161 = vadd.f32 %v157, 0.5
      %v162 = vlaneseq
      %v163 = vshrl.u32 %v162, 7
      %v164 = vadd.s32 %v163, 8
      %v165 = vcvt.s32.f32 %v163
      %v166 = vcvt.s32.f32 %v164
      %v167 = vld [vmem:[%s139] sm:$0xff]
      %v168 = vld [vmem:[%s139 + $0x8] sm:$0xff]
      %vm169 = vcmask 523264
      %v170 = vsel %vm169, %v167, -inf
      %v171 = vsel %vm169, %v168, -inf
      %v172 = vmax.f32 %v170, %v171
      %v173 = vrot.slane %v172, 4
      %v174 = vmax.f32 %v172, %v173
      %v175 = vrot.slane %v174, 2
      %v176 = vmax.f32 %v174, %v175
      %v177 = vrot.slane %v176, 1
      %v178 = vmax.f32 %v176, %v177
      %v179 = vsub.f32 %v167, %v178
      %v180 = vsub.f32 %v168, %v178
      %v181 = vmul.f32 %v179, 1.442695
      %v182 = vpow.pop %v181
      %v183 = vmul.f32 %v180, 1.442695
      %v184 = vpow.pop %v183
      %v185 = vmul.f32 %v182, %v165
      %v186 = vmul.f32 %v184, %v166
      %v187 = vsel %vm169, %v185, 0.0
      %v188 = vsel %vm169, %v186, 0.0
      %v189 = vadd.f32 %v187, %v188
      %v190 = vrot.slane %v189, 4
      %v191 = vadd.f32 %v189, %v190
      %v192 = vrot.slane %v191, 2
      %v193 = vadd.f32 %v191, %v192
      %v194 = vrot.slane %v193, 1
      %v195 = vadd.f32 %v193, %v194
      %v196 = vsel %vm169, %v182, 0.0
      %v197 = vsel %vm169, %v184, 0.0
      %v198 = vadd.f32 %v196, %v197
      %v199 = vrot.slane %v198, 4
      %v200 = vadd.f32 %v198, %v199
      %v201 = vrot.slane %v200, 2
      %v202 = vadd.f32 %v200, %v201
      %v203 = vrot.slane %v202, 1
      %v204 = vadd.f32 %v202, %v203
      %v205 = vrcp.pop %v204
      %v206 = vmul.f32 %v195, %v205
      %v207 = vld [vmem:[%s139 + $0x10] sm:$0xff]
      %v208 = vld [vmem:[%s139 + $0x18] sm:$0xff]
      %v209 = vsel %vm169, %v207, -inf
      %v210 = vsel %vm169, %v208, -inf
      %v211 = vmax.f32 %v209, %v210
      %v212 = vrot.slane %v211, 4
      %v213 = vmax.f32 %v211, %v212
      %v214 = vrot.slane %v213, 2
      %v215 = vmax.f32 %v213, %v214
      %v216 = vrot.slane %v215, 1
      %v217 = vmax.f32 %v215, %v216
      %v218 = vsub.f32 %v207, %v217
      %v219 = vsub.f32 %v208, %v217
      %v220 = vmul.f32 %v218, 1.442695
      %v221 = vpow.pop %v220
      %v222 = vmul.f32 %v219, 1.442695
      %v223 = vpow.pop %v222
      %v224 = vmul.f32 %v221, %v165
      %v225 = vmul.f32 %v223, %v166
      %v226 = vsel %vm169, %v224, 0.0
      %v227 = vsel %vm169, %v225, 0.0
      %v228 = vadd.f32 %v226, %v227
      %v229 = vrot.slane %v228, 4
      %v230 = vadd.f32 %v228, %v229
      %v231 = vrot.slane %v230, 2
      %v232 = vadd.f32 %v230, %v231
      %v233 = vrot.slane %v232, 1
      %v234 = vadd.f32 %v232, %v233
      %v235 = vsel %vm169, %v221, 0.0
      %v236 = vsel %vm169, %v223, 0.0
      %v237 = vadd.f32 %v235, %v236
      %v238 = vrot.slane %v237, 4
      %v239 = vadd.f32 %v237, %v238
      %v240 = vrot.slane %v239, 2
      %v241 = vadd.f32 %v239, %v240
      %v242 = vrot.slane %v241, 1
      %v243 = vadd.f32 %v241, %v242
      %v244 = vrcp.pop %v243
      %v245 = vmul.f32 %v234, %v244
      %v246 = vld [vmem:[%s139 + $0x20] sm:$0xff]
      %v247 = vld [vmem:[%s139 + $0x28] sm:$0xff]
      %v248 = vsel %vm169, %v246, -inf
      %v249 = vsel %vm169, %v247, -inf
      %v250 = vmax.f32 %v248, %v249
      %v251 = vrot.slane %v250, 4
      %v252 = vmax.f32 %v250, %v251
      %v253 = vrot.slane %v252, 2
      %v254 = vmax.f32 %v252, %v253
      %v255 = vrot.slane %v254, 1
      %v256 = vmax.f32 %v254, %v255
      %v257 = vsub.f32 %v246, %v256
      %v258 = vsub.f32 %v247, %v256
      %v259 = vmul.f32 %v257, 1.442695
      %v260 = vpow.pop %v259
      %v261 = vmul.f32 %v258, 1.442695
      %v262 = vpow.pop %v261
      %v263 = vmul.f32 %v260, %v165
      %v264 = vmul.f32 %v262, %v166
      %v265 = vsel %vm169, %v263, 0.0
      %v266 = vsel %vm169, %v264, 0.0
      %v267 = vadd.f32 %v265, %v266
      %v268 = vrot.slane %v267, 4
      %v269 = vadd.f32 %v267, %v268
      %v270 = vrot.slane %v269, 2
      %v271 = vadd.f32 %v269, %v270
      %v272 = vrot.slane %v271, 1
      %v273 = vadd.f32 %v271, %v272
      %v274 = vsel %vm169, %v260, 0.0
      %v275 = vsel %vm169, %v262, 0.0
      %v276 = vadd.f32 %v274, %v275
      %v277 = vrot.slane %v276, 4
      %v278 = vadd.f32 %v276, %v277
      %v279 = vrot.slane %v278, 2
      %v280 = vadd.f32 %v278, %v279
      %v281 = vrot.slane %v280, 1
      %v282 = vadd.f32 %v280, %v281
      %v283 = vrcp.pop %v282
      %v284 = vmul.f32 %v273, %v283
      %v285 = vld [vmem:[%s139 + $0x30] sm:$0xff]
      %v286 = vld [vmem:[%s139 + $0x38] sm:$0xff]
      %v287 = vsel %vm169, %v285, -inf
      %v288 = vsel %vm169, %v286, -inf
      %v289 = vmax.f32 %v287, %v288
      %v290 = vrot.slane %v289, 4
      %v291 = vmax.f32 %v289, %v290
      %v292 = vrot.slane %v291, 2
      %v293 = vmax.f32 %v291, %v292
      %v294 = vrot.slane %v293, 1
      %v295 = vmax.f32 %v293, %v294
      %v296 = vsub.f32 %v285, %v295
      %v297 = vsub.f32 %v286, %v295
      %v298 = vmul.f32 %v296, 1.442695
      %v299 = vpow.pop %v298
      %v300 = vmul.f32 %v297, 1.442695
      %v301 = vpow.pop %v300
      %v302 = vmul.f32 %v299, %v165
      %v303 = vmul.f32 %v301, %v166
      %v304 = vsel %vm169, %v302, 0.0
      %v305 = vsel %vm169, %v303, 0.0
      %v306 = vadd.f32 %v304, %v305
      %v307 = vrot.slane %v306, 4
      %v308 = vadd.f32 %v306, %v307
      %v309 = vrot.slane %v308, 2
      %v310 = vadd.f32 %v308, %v309
      %v311 = vrot.slane %v310, 1
      %v312 = vadd.f32 %v310, %v311
      %v313 = vsel %vm169, %v299, 0.0
      %v314 = vsel %vm169, %v301, 0.0
      %v315 = vadd.f32 %v313, %v314
      %v316 = vrot.slane %v315, 4
      %v317 = vadd.f32 %v315, %v316
      %v318 = vrot.slane %v317, 2
      %v319 = vadd.f32 %v317, %v318
      %v320 = vrot.slane %v319, 1
      %v321 = vadd.f32 %v319, %v320
      %v322 = vrcp.pop %v321
      %v323 = vmul.f32 %v312, %v322
      %v324 = vsub.f32 %v160, %v206
      %v325 = vsub.f32 %v161, %v245
      %v326 = vadd.f32 %v160, %v284
      %v327 = vadd.f32 %v161, %v323
      %v328 = vadd.f32 %v324, %v326
      %v329 = vmul.f32 %v328, 0.5
      %v330 = vadd.f32 %v325, %v327
      %v331 = vmul.f32 %v330, 0.5
      %v332 = vsub.f32 %v326, %v324
      %v333 = vsub.f32 %v327, %v325
      %vm334 = vcmask 1040384
      %v335 = vsel %vm334, %v329, %v331
      %vm336 = vcmask 1041408
      %v337 = vsel %vm336, %v335, %v332
      %vm338 = vcmask 1042432
      %v339 = vsel %vm338, %v337, %v333
      %v340 = vmul.f32 %v339, 8.0
      %vm341 = vcmask 519168
      %342 = vst.msk [vmem:[%s147] sm:$0xf] %vm341, %v340
      %v343 = vld [vmem:[%s139 + $0x40] sm:$0xff]
      %v344 = vld [vmem:[%s139 + $0x48] sm:$0xff]
      %v345 = vld [vmem:[%s139 + $0x50] sm:$0xff]
      %v346 = vld [vmem:[%s139 + $0x58] sm:$0xff]
      %v347 = vld [vmem:[%s139 + $0x60] sm:$0xff]
      %v348 = vld [vmem:[%s139 + $0x68] sm:$0xff]
      %v349 = vld [vmem:[%s139 + $0x70] sm:$0xff]
      %v350 = vld [vmem:[%s139 + $0x78] sm:$0xff]
      %v351 = vld [vmem:[%s139 + $0x80] sm:$0xff]
      %v352 = vld [vmem:[%s139 + $0x88] sm:$0xff]
      %v353 = vand.u32 2147483647, %v343
      %v354 = vand.u32 2147483647, %v344
      %v355 = vand.u32 2147483647, %v345
      %v356 = vand.u32 2147483647, %v346
      %v357 = vand.u32 2147483647, %v347
      %v358 = vand.u32 2147483647, %v348
      %v359 = vand.u32 2147483647, %v349
      %v360 = vand.u32 2147483647, %v350
      %v361 = vand.u32 2147483647, %v351
      %v362 = vand.u32 2147483647, %v352
      %v363 = vsub.f32 0.0, %v353
      %v364 = vsub.f32 0.0, %v354
      %v365 = vsub.f32 0.0, %v355
      %v366 = vsub.f32 0.0, %v356
      %v367 = vsub.f32 0.0, %v357
      %v368 = vsub.f32 0.0, %v358
      %v369 = vsub.f32 0.0, %v359
      %v370 = vsub.f32 0.0, %v360
      %v371 = vsub.f32 0.0, %v361
      %v372 = vsub.f32 0.0, %v362
      %v373 = vmul.f32 %v363, 1.442695
      %v374 = vpow.pop %v373
      %v375 = vmul.f32 %v364, 1.442695
      %v376 = vpow.pop %v375
      %v377 = vmul.f32 %v365, 1.442695
      %v378 = vpow.pop %v377
      %v379 = vmul.f32 %v366, 1.442695
      %v380 = vpow.pop %v379
      %v381 = vmul.f32 %v367, 1.442695
      %v382 = vpow.pop %v381
      %v383 = vmul.f32 %v368, 1.442695
      %v384 = vpow.pop %v383
      %v385 = vmul.f32 %v369, 1.442695
      %v386 = vpow.pop %v385
      %v387 = vmul.f32 %v370, 1.442695
      %v388 = vpow.pop %v387
      %v389 = vmul.f32 %v371, 1.442695
      %v390 = vpow.pop %v389
      %v391 = vmul.f32 %v372, 1.442695
      %v392 = vpow.pop %v391
      %v393 = vadd.f32 %v374, 1.0
      %v394 = vadd.f32 %v376, 1.0
      %v395 = vadd.f32 %v378, 1.0
      %v396 = vadd.f32 %v380, 1.0
      %v397 = vadd.f32 %v382, 1.0
      %v398 = vadd.f32 %v384, 1.0
      %v399 = vadd.f32 %v386, 1.0
      %v400 = vadd.f32 %v388, 1.0
      %v401 = vadd.f32 %v390, 1.0
      %v402 = vadd.f32 %v392, 1.0
      %v403 = vrcp.pop %v393
      %v404 = vrcp.pop %v394
      %v405 = vrcp.pop %v395
      %v406 = vrcp.pop %v396
      %v407 = vrcp.pop %v397
      %v408 = vrcp.pop %v398
      %v409 = vrcp.pop %v399
      %v410 = vrcp.pop %v400
      %v411 = vrcp.pop %v401
      %v412 = vrcp.pop %v402
      %vm413 = vcmp.ge.f32.partialorder %v343, 0.0
      %vm414 = vcmp.ge.f32.partialorder %v344, 0.0
      %vm415 = vcmp.ge.f32.partialorder %v345, 0.0
      %vm416 = vcmp.ge.f32.partialorder %v346, 0.0
      %vm417 = vcmp.ge.f32.partialorder %v347, 0.0
      %vm418 = vcmp.ge.f32.partialorder %v348, 0.0
      %vm419 = vcmp.ge.f32.partialorder %v349, 0.0
      %vm420 = vcmp.ge.f32.partialorder %v350, 0.0
      %vm421 = vcmp.ge.f32.partialorder %v351, 0.0
      %vm422 = vcmp.ge.f32.partialorder %v352, 0.0
      %v423 = vmul.f32 %v374, %v403
      %v424 = vmul.f32 %v376, %v404
      %v425 = vmul.f32 %v378, %v405
      %v426 = vmul.f32 %v380, %v406
      %v427 = vmul.f32 %v382, %v407
      %v428 = vmul.f32 %v384, %v408
      %v429 = vmul.f32 %v386, %v409
      %v430 = vmul.f32 %v388, %v410
      %v431 = vmul.f32 %v390, %v411
      %v432 = vmul.f32 %v392, %v412
      %v433 = vsel %vm413, %v403, %v423
      %v434 = vsel %vm414, %v404, %v424
      %v435 = vsel %vm415, %v405, %v425
      %v436 = vsel %vm416, %v406, %v426
      %v437 = vsel %vm417, %v407, %v427
      %v438 = vsel %vm418, %v408, %v428
      %v439 = vsel %vm419, %v409, %v429
      %v440 = vsel %vm420, %v410, %v430
      %v441 = vsel %vm421, %v411, %v431
      %v442 = vsel %vm422, %v412, %v432
      %443 = vst.msk [vmem:[%s147 + $0x4] sm:$0xff] %vm169, %v433
      %444 = vst.msk [vmem:[%s147 + $0xc] sm:$0xff] %vm169, %v434
      %445 = vst.msk [vmem:[%s147 + $0x14] sm:$0xff] %vm169, %v435
      %446 = vst.msk [vmem:[%s147 + $0x1c] sm:$0xff] %vm169, %v436
      %447 = vst.msk [vmem:[%s147 + $0x24] sm:$0xff] %vm169, %v437
      %448 = vst.msk [vmem:[%s147 + $0x2c] sm:$0xff] %vm169, %v438
      %449 = vst.msk [vmem:[%s147 + $0x34] sm:$0xff] %vm169, %v439
      %450 = vst.msk [vmem:[%s147 + $0x3c] sm:$0xff] %vm169, %v440
      %451 = vst.msk [vmem:[%s147 + $0x44] sm:$0xff] %vm169, %v441
      %452 = vst.msk [vmem:[%s147 + $0x4c] sm:$0xff] %vm169, %v442
      %p453 = scmp.lt.s32.totalorder %s16, 1
      %s454 = scalar_select %p453, %s16, 1
      %p455 = scmp.lt.s32.totalorder %s17, 0
      %s456 = scalar_select %p455, %s17, 0
      %s457 = smul.addr %s454, 11
      %s458 = sadd.s32 %s456, %s457
      %s459 = smul.addr %s458, 8
      %s460 = scalar_lea.vmem %s1, %s459
      // Predicated region
      $region25: #{tpu_custom_call.1} parent=23 // pred_check
        %p461 = pneg %p72
      $region26: #{tpu_custom_call.1} parent=23 // pred_check_branch
        %463 = sbr.rel (%p461) target = $region28
      $region27: #{tpu_custom_call.1} parent=23 // pred_region
        _
      $region28: #{tpu_custom_call.1} parent=23 // pred_fallthru
        _
    $region24: #{tpu_custom_call.1} parent=5 // pred_fallthru
      _
    %p464 = scmp.le.s32.totalorder 2, %s7
    // Predicated region
    $region29: #{tpu_custom_call.1} parent=5 // pred_check
      %p465 = pneg %p464
    $region30: #{tpu_custom_call.1} parent=5 // pred_check_branch
      %467 = sbr.rel (%p465) target = $region32
    $region31: #{tpu_custom_call.1} parent=5 // pred_region
      %s468 = ssub.s32 %s7, 2
      // Predicated region
      $region33: #{tpu_custom_call.1} parent=31 // pred_check
        %p469 = pneg %p78
      $region34: #{tpu_custom_call.1} parent=31 // pred_check_branch
        %471 = sbr.rel (%p469) target = $region36
      $region35: #{tpu_custom_call.1} parent=31 // pred_region
        %p472 = scmp.lt.s32.totalorder %s18, 1
        %s473 = scalar_select %p472, %s18, 1
        %p474 = scmp.lt.s32.totalorder %s19, 0
        %s475 = scalar_select %p474, %s19, 0
        %s476 = smul.addr %s473, 11
        %s477 = sadd.s32 %s475, %s476
        %s478 = smul.addr %s477, 8
        %s479 = scalar_lea.vmem %s1, %s478
      $region36: #{tpu_custom_call.1} parent=31 // pred_fallthru
        _
    $region32: #{tpu_custom_call.1} parent=5 // pred_fallthru
      _
  $region6: #{tpu_custom_call.1} parent=0 // loop_footer
    %s11 = sadd.s32 1, %s7
  $region7: #{tpu_custom_call.1} parent=0 // loop_footer_branch
    %6 = sbr.rel target = $region3
  $region8: #{tpu_custom_call.1} parent=0 // loop_exit
    _

</llo_original>
